<compile_context>
chip_gen: v7x
topology: tpu7x:2x2x1
jax: 0.10.0
libtpu: 0.0.40
codegen_flags: <defaults>
</compile_context>

<pallas_src>
import functools

import jax
import jax.numpy as jnp
from jax.experimental import pallas as pl
from jax.experimental.pallas import tpu as pltpu


def _addnorm_kernel(x_ref, y_ref, *rest, keep_scale, eps, has_dropout):
    """Computes LayerNorm(dropout(Y) + X) for one tile of rows."""
    if has_dropout:
        mask_ref, gamma_ref, beta_ref, o_ref = rest
    else:
        gamma_ref, beta_ref, o_ref = rest

    x = x_ref[...].astype(jnp.float32)
    y = y_ref[...].astype(jnp.float32)

    if has_dropout:
        # Inverted dropout from a precomputed uint8 keep mask: one compare,
        # one select, one constant scale -- no int->float uniform conversion.
        y = jnp.where(mask_ref[...] != 0, y * keep_scale, 0.0)

    z = x + y                                            # residual add

    # Fused single-pass LayerNorm statistics: sum(z) and sum(z*z) are
    # independent reductions (both can issue to the XLU without waiting on a
    # VALU subtract), then var = E[z^2] - mean^2 (stats kept in f32).
    inv_h = 1.0 / z.shape[-1]
    s = jnp.sum(z, axis=-1, keepdims=True)
    sq = jnp.sum(z * z, axis=-1, keepdims=True)
    mean = s * inv_h
    var = jnp.maximum(sq * inv_h - mean * mean, 0.0)     # clamp tiny negatives
    inv = jax.lax.rsqrt(var + eps)

    gamma = gamma_ref[...].astype(jnp.float32)
    beta = beta_ref[...].astype(jnp.float32)
    o_ref[...] = ((z - mean) * inv * gamma + beta).astype(o_ref.dtype)


def _choose_row_tile(n_rows, bytes_per_row, budget_bytes=32 * 1024 * 1024,
                     max_rows=1024):
    """Largest row tile whose double-buffered streams fit the VMEM budget."""
    rows = budget_bytes // (2 * max(bytes_per_row, 1))   # 2x for double-buffer
    rows = int(max(8, min(rows, max_rows, n_rows)))
    if rows < n_rows:
        rows -= rows % 8                                  # sublane alignment
        rows = max(rows, 8)
    return rows


def add_norm(x, y, gamma, beta, *, dropout_rate=0.0, rng_key=None,
             eps=1e-5, row_tile=None):
    """AddNorm forward: LayerNorm(dropout(Y) + X), LN over the last axis."""
    B, S, H = x.shape
    R = B * S
    x2 = x.reshape(R, H)
    y2 = y.reshape(R, H)
    gamma2 = gamma.reshape(1, H)
    beta2 = beta.reshape(1, H)

    has_dropout = dropout_rate > 0.0
    keep_scale = 1.0 / (1.0 - dropout_rate) if has_dropout else 1.0

    # Bytes streamed per row (X + Y + output, plus uint8 mask when training).
    out_itemsize = jnp.dtype(x.dtype).itemsize
    bytes_per_row = H * (x2.dtype.itemsize + y2.dtype.itemsize + out_itemsize
                         + (1 if has_dropout else 0))
    if row_tile is None:
        row_tile = _choose_row_tile(R, bytes_per_row)
    grid = (pl.cdiv(R, row_tile),)

    # Explicit scoped-VMEM limit sized to the tile (stays well under v7x's
    # 64 MiB physical VMEM while exceeding the small scoped defaults).
    vmem_needed = 2 * row_tile * bytes_per_row + 2 * H * 4
    vmem_limit = int(min(max(vmem_needed * 3 // 2, 32 * 1024 * 1024),
                         48 * 1024 * 1024))

    inputs = [x2, y2]
    in_specs = [
        pl.BlockSpec((row_tile, H), lambda i: (i, 0)),          # X
        pl.BlockSpec((row_tile, H), lambda i: (i, 0)),          # Y
    ]
    if has_dropout:
        if rng_key is None:
            rng_key = jax.random.PRNGKey(0)
        # Keep mask generated outside the kernel (portable: no TPU-only PRNG
        # primitives), stored as uint8 so it adds only 1 byte/element of HBM
        # traffic in the training path.
        keep = jax.random.bernoulli(rng_key, 1.0 - dropout_rate, (R, H))
        inputs.append(keep.astype(jnp.uint8))
        in_specs.append(pl.BlockSpec((row_tile, H), lambda i: (i, 0)))  # mask
    inputs += [gamma2, beta2]
    in_specs += [
        pl.BlockSpec((1, H), lambda i: (0, 0)),                 # gamma (resident)
        pl.BlockSpec((1, H), lambda i: (0, 0)),                 # beta  (resident)
    ]

    kernel = functools.partial(_addnorm_kernel,
                               keep_scale=float(keep_scale),
                               eps=float(eps),
                               has_dropout=has_dropout)

    # TODO(synk): for best lane utilization H should be a multiple of 128 in
    # real deployments; the demo H=32 matches the module spec but under-fills
    # the 128-wide lanes.
    out = pl.pallas_call(
        kernel,
        out_shape=jax.ShapeDtypeStruct((R, H), x.dtype),
        grid=grid,
        in_specs=in_specs,
        out_specs=pl.BlockSpec((row_tile, H), lambda i: (i, 0)),
        compiler_params=pltpu.CompilerParams(
            dimension_semantics=("parallel",),
            vmem_limit_bytes=vmem_limit,
        ),
    )(*inputs)
    return out.reshape(B, S, H)


def _reference(x, y_after_dropout, gamma, beta, eps=1e-5):
    """Pure-JAX reference: LayerNorm(y_after_dropout + x)."""
    z = (x + y_after_dropout).astype(jnp.float32)
    mean = jnp.mean(z, axis=-1, keepdims=True)
    var = jnp.mean((z - mean) ** 2, axis=-1, keepdims=True)
    return ((z - mean) * jax.lax.rsqrt(var + eps)) * gamma + beta


if __name__ == "__main__":
    B, S, H = 2, 8, 32     # batch=2, seq=8, hidden=32 ; normalized_shape=(32,)
    key = jax.random.PRNGKey(0)
    kx, ky, kd = jax.random.split(key, 3)
    X = jax.random.normal(kx, (B, S, H), dtype=jnp.float32)
    Y = jax.random.normal(ky, (B, S, H), dtype=jnp.float32)

    # Deterministic LayerNorm parameters (shape = normalized_shape = (H,)).
    gamma = jnp.linspace(0.5, 1.5, H, dtype=jnp.float32)
    beta = jnp.linspace(-0.1, 0.1, H, dtype=jnp.float32)

    # Eval mode (dropout is identity) -- check against pure-JAX reference.
    out_eval = add_norm(X, Y, gamma, beta, dropout_rate=0.0)
    out_eval = jax.block_until_ready(out_eval)
    ref_eval = _reference(X, Y, gamma, beta)
    assert jnp.allclose(out_eval, ref_eval, atol=1e-5, rtol=1e-5), "eval mismatch"

    # Training mode with dropout p=0.1 -- rebuild the same mask for a reference.
    p = 0.1
    out_train = add_norm(X, Y, gamma, beta, dropout_rate=p, rng_key=kd)
    out_train = jax.block_until_ready(out_train)
    keep = jax.random.bernoulli(kd, 1.0 - p, (B * S, H)).reshape(B, S, H)
    y_drop = jnp.where(keep, Y * (1.0 / (1.0 - p)), 0.0)
    ref_train = _reference(X, y_drop, gamma, beta)
    assert jnp.allclose(out_train, ref_train, atol=1e-5, rtol=1e-5), "train mismatch"

    print("KERNEL_OK")
</pallas_src>

<mosaic_0001>
module attributes {stable_mosaic.version = 11 : i64} {
  func.func @_addnorm_kernel(%arg0: i32, %arg1: memref<16x32xf32, #tpu.memory_space<vmem>>, %arg2: memref<16x32xf32, #tpu.memory_space<vmem>>, %arg3: memref<1x32xf32, #tpu.memory_space<vmem>>, %arg4: memref<1x32xf32, #tpu.memory_space<vmem>>, %arg5: memref<16x32xf32, #tpu.memory_space<vmem>>) attributes {dimension_semantics = [#tpu.dimension_semantics<parallel>], iteration_bounds = array<i64: 1>, scalar_prefetch = 0 : i64, scratch_operands = 0 : i64, tpu.core_type = #tpu.core_type<tc>, window_params = [{transform_indices = @transform_0, window_bounds = array<i64: 16, 32>}, {transform_indices = @transform_1, window_bounds = array<i64: 16, 32>}, {pipeline_mode = #tpu.pipeline_mode<synchronous>, transform_indices = @transform_2, window_bounds = array<i64: 1, 32>}, {pipeline_mode = #tpu.pipeline_mode<synchronous>, transform_indices = @transform_3, window_bounds = array<i64: 1, 32>}, {transform_indices = @transform_4, window_bounds = array<i64: 16, 32>}]} {
    %c0 = arith.constant 0 : index
    %c0_0 = arith.constant 0 : index
    %0 = vector.load %arg1[%c0, %c0_0] : memref<16x32xf32, #tpu.memory_space<vmem>>, vector<16x32xf32>
    %c0_1 = arith.constant 0 : index
    %c0_2 = arith.constant 0 : index
    %1 = vector.load %arg2[%c0_1, %c0_2] : memref<16x32xf32, #tpu.memory_space<vmem>>, vector<16x32xf32>
    %2 = arith.addf %0, %1 : vector<16x32xf32>
    %cst = arith.constant dense<0.000000e+00> : vector<16xf32>
    %3 = vector.multi_reduction <add>, %2, %cst [1] : vector<16x32xf32> to vector<16xf32>
    %4 = vector.shape_cast %3 : vector<16xf32> to vector<16x1xf32>
    %5 = arith.mulf %2, %2 : vector<16x32xf32>
    %cst_3 = arith.constant dense<0.000000e+00> : vector<16xf32>
    %6 = vector.multi_reduction <add>, %5, %cst_3 [1] : vector<16x32xf32> to vector<16xf32>
    %7 = vector.shape_cast %6 : vector<16xf32> to vector<16x1xf32>
    %cst_4 = arith.constant 3.125000e-02 : f32
    %8 = vector.broadcast %cst_4 : f32 to vector<16x1xf32>
    %9 = arith.mulf %4, %8 : vector<16x1xf32>
    %cst_5 = arith.constant 3.125000e-02 : f32
    %10 = vector.broadcast %cst_5 : f32 to vector<16x1xf32>
    %11 = arith.mulf %7, %10 : vector<16x1xf32>
    %12 = arith.mulf %9, %9 : vector<16x1xf32>
    %13 = arith.subf %11, %12 : vector<16x1xf32>
    %cst_6 = arith.constant 0.000000e+00 : f32
    %14 = vector.broadcast %cst_6 : f32 to vector<16x1xf32>
    %15 = arith.maximumf %13, %14 : vector<16x1xf32>
    %cst_7 = arith.constant 9.99999974E-6 : f32
    %16 = vector.broadcast %cst_7 : f32 to vector<16x1xf32>
    %17 = arith.addf %15, %16 : vector<16x1xf32>
    %18 = math.rsqrt %17 : vector<16x1xf32>
    %c0_8 = arith.constant 0 : index
    %c0_9 = arith.constant 0 : index
    %19 = vector.load %arg3[%c0_8, %c0_9] : memref<1x32xf32, #tpu.memory_space<vmem>>, vector<1x32xf32>
    %c0_10 = arith.constant 0 : index
    %c0_11 = arith.constant 0 : index
    %20 = vector.load %arg4[%c0_10, %c0_11] : memref<1x32xf32, #tpu.memory_space<vmem>>, vector<1x32xf32>
    %21 = vector.broadcast %9 : vector<16x1xf32> to vector<16x32xf32>
    %22 = arith.subf %2, %21 : vector<16x32xf32>
    %23 = vector.broadcast %18 : vector<16x1xf32> to vector<16x32xf32>
    %24 = arith.mulf %22, %23 : vector<16x32xf32>
    %25 = vector.broadcast %19 : vector<1x32xf32> to vector<16x32xf32>
    %26 = arith.mulf %24, %25 : vector<16x32xf32>
    %27 = vector.broadcast %20 : vector<1x32xf32> to vector<16x32xf32>
    %28 = arith.addf %26, %27 : vector<16x32xf32>
    %c0_12 = arith.constant 0 : index
    %c0_13 = arith.constant 0 : index
    %29 = vector.load %arg5[%c0_12, %c0_13] : memref<16x32xf32, #tpu.memory_space<vmem>>, vector<16x32xf32>
    tpu.vector_store %arg5[%c0_12, %c0_13], %28 {strides = array<i32>} : memref<16x32xf32, #tpu.memory_space<vmem>>, vector<16x32xf32>,
    return
  }
  func.func @transform_0(%arg0: i32) -> (i32, i32) {
    %c0_i32 = arith.constant 0 : i32
    %c0_i32_0 = arith.constant 0 : i32
    return %arg0, %c0_i32 : i32, i32
  }
  func.func @transform_1(%arg0: i32) -> (i32, i32) {
    %c0_i32 = arith.constant 0 : i32
    %c0_i32_0 = arith.constant 0 : i32
    return %arg0, %c0_i32 : i32, i32
  }
  func.func @transform_2(%arg0: i32) -> (i32, i32) {
    %c0_i32 = arith.constant 0 : i32
    %c0_i32_0 = arith.constant 0 : i32
    %c0_i32_1 = arith.constant 0 : i32
    return %c0_i32, %c0_i32_0 : i32, i32
  }
  func.func @transform_3(%arg0: i32) -> (i32, i32) {
    %c0_i32 = arith.constant 0 : i32
    %c0_i32_0 = arith.constant 0 : i32
    %c0_i32_1 = arith.constant 0 : i32
    return %c0_i32, %c0_i32_0 : i32, i32
  }
  func.func @transform_4(%arg0: i32) -> (i32, i32) {
    %c0_i32 = arith.constant 0 : i32
    %c0_i32_0 = arith.constant 0 : i32
    return %arg0, %c0_i32 : i32, i32
  }
}

</mosaic_0001>

<llo_original>
// kernel: tpu_custom_call.1
$region0: #{tpu_custom_call.1}
  #allocation0 [shape = 'u32[]', space=smem, size = 0x4, offset = 0x4, fixed_abs, tag = 'smem constant byte address 0x4 - core index']
  #allocation1 [shape = 'u32[144,128]{1,0:T(1,128)}', space=vmem, size = 0x12000, scoped, tag = 'internal scratch']
  %s0 = inlined_call_operand.hbm [shape: f32[16,32], index: 0, kind: input, shape index: {}]
  %s1 = inlined_call_operand.hbm [shape: f32[16,32], index: 1, kind: input, shape index: {}]
  %s2 = inlined_call_operand.vmem [shape: f32[1,32], index: 2, kind: input, shape index: {}]
  %s3 = inlined_call_operand.vmem [shape: f32[1,32], index: 3, kind: input, shape index: {}]
  %s4 = inlined_call_operand.hbm [shape: f32[16,32], index: 4, kind: output, shape index: {}]
  %s5 = sld [smem:[#allocation0]]
  $region34: #{tpu_custom_call.1} parent=0
    _
  %s7 = ssub.s32 1, %s5
  %s8 = scalar_select 0, %s7, %s5
  $region1: #{tpu_custom_call.1} parent=0
    #allocation2 [shape = 'u8[8192]{0}', space=vmem, size = 0x2000, scoped, tag = 'input window, operand 0, single buffered']
    #allocation3 [shape = 's32[1]{0}', space=sflag, size = 0x4, scoped, tag = 'scoped memory for tpu_custom_call.1']
    #allocation4 [shape = 's32[1]{0}', space=sflag, size = 0x4, scoped, tag = 'scoped memory for tpu_custom_call.1']
    #allocation5 [shape = 'u8[8192]{0}', space=vmem, size = 0x2000, scoped, tag = 'input window, operand 1, single buffered']
    #allocation6 [shape = 's32[1]{0}', space=sflag, size = 0x4, scoped, tag = 'scoped memory for tpu_custom_call.1']
    #allocation7 [shape = 'u8[8192]{0}', space=vmem, size = 0x2000, scoped, tag = 'output window, operand 0, single buffered']
    %9 = vsyncpa [#allocation3], 0
    %10 = vsyncpa [#allocation6], 0
    %11 = vsyncpa [#allocation4], 0
    // Predicated region
    $region2: #{tpu_custom_call.1} parent=1 // pred_check
      _
    $region3: #{tpu_custom_call.1} parent=1 // pred_check_branch
      %13 = sbr.rel (0) target = $region5
    $region4: #{tpu_custom_call.1} parent=1 // pred_region
      %s15 = ssub.s32 256, 256
      %16 = vsyncadd [#allocation3], %s15
      %s17 = sshll.u32 [#allocation2], 4
      %s18 = int_to_ptr.vmem [resolvable:$true] %s17
      %23 = dma.hbm_to_vmem [thread:$0]  %s0, 256, %s18, [#allocation3], 128, 128, 8
    $region5: #{tpu_custom_call.1} parent=1 // pred_fallthru
      _
    // Predicated region
    $region6: #{tpu_custom_call.1} parent=1 // pred_check
      _
    $region7: #{tpu_custom_call.1} parent=1 // pred_check_branch
      %25 = sbr.rel (0) target = $region9
    $region8: #{tpu_custom_call.1} parent=1 // pred_region
      %s27 = ssub.s32 256, 256
      %28 = vsyncadd [#allocation6], %s27
      %s29 = sshll.u32 [#allocation5], 4
      %s30 = int_to_ptr.vmem [resolvable:$true] %s29
      %35 = dma.hbm_to_vmem [thread:$0]  %s1, 256, %s30, [#allocation6], 128, 128, 8
    $region9: #{tpu_custom_call.1} parent=1 // pred_fallthru
      _
    // Predicated region
    $region10: #{tpu_custom_call.1} parent=1 // pred_check
      _
    $region11: #{tpu_custom_call.1} parent=1 // pred_check_branch
      %37 = sbr.rel (0) target = $region13
    $region12: #{tpu_custom_call.1} parent=1 // pred_region
      _
    $region13: #{tpu_custom_call.1} parent=1 // pred_fallthru
      _
    // Predicated region
    $region14: #{tpu_custom_call.1} parent=1 // pred_check
      _
    $region15: #{tpu_custom_call.1} parent=1 // pred_check_branch
      %39 = sbr.rel (0) target = $region17
    $region16: #{tpu_custom_call.1} parent=1 // pred_region
      _
    $region17: #{tpu_custom_call.1} parent=1 // pred_fallthru
      _
    // Predicated region
    $region18: #{tpu_custom_call.1} parent=1 // pred_check
      _
    $region19: #{tpu_custom_call.1} parent=1 // pred_check_branch
      %41 = sbr.rel (0) target = $region21
    $region20: #{tpu_custom_call.1} parent=1 // pred_region
      %42 = dma.done [#allocation3], 256
    $region21: #{tpu_custom_call.1} parent=1 // pred_fallthru
      _
    // Predicated region
    $region22: #{tpu_custom_call.1} parent=1 // pred_check
      _
    $region23: #{tpu_custom_call.1} parent=1 // pred_check_branch
      %44 = sbr.rel (0) target = $region25
    $region24: #{tpu_custom_call.1} parent=1 // pred_region
      %45 = dma.done [#allocation6], 256
    $region25: #{tpu_custom_call.1} parent=1 // pred_fallthru
      _
    %v46 = vld [vmem:[#allocation2] sm:$0xff]
    %v47 = vld [vmem:[#allocation2 + $0x8] sm:$0xff]
    %v48 = vld [vmem:[#allocation5] sm:$0xff]
    %v49 = vld [vmem:[#allocation5 + $0x8] sm:$0xff]
    %v50 = vadd.f32 %v46, %v48
    %v51 = vadd.f32 %v47, %v49
    %vm52 = vcmask 261120
    %v53 = vsel %vm52, %v50, 0.0
    %54 = vadd.xlane.f32.xlu0 %v53
    %v55 = vpop.xlane.xlu0 %54
    %v56 = vsel %vm52, %v51, 0.0
    %57 = vadd.xlane.f32.xlu0 %v56
    %v58 = vpop.xlane.xlu0 %57
    %v59 = vmul.f32 %v50, %v50
    %v60 = vmul.f32 %v51, %v51
    %v61 = vsel %vm52, %v59, 0.0
    %62 = vadd.xlane.f32.xlu0 %v61
    %v63 = vpop.xlane.xlu0 %62
    %v64 = vsel %vm52, %v60, 0.0
    %65 = vadd.xlane.f32.xlu0 %v64
    %v66 = vpop.xlane.xlu0 %65
    %v67 = vmul.f32 %v55, 0.03125
    %v68 = vmul.f32 %v58, 0.03125
    %v69 = vmul.f32 %v63, 0.03125
    %v70 = vmul.f32 %v66, 0.03125
    %v71 = vmul.f32 %v67, %v67
    %v72 = vmul.f32 %v68, %v68
    %v73 = vsub.f32 %v69, %v71
    %v74 = vsub.f32 %v70, %v72
    %v75 = vmax.f32 %v73, 0.0
    %v76 = vmax.f32 %v74, 0.0
    %v77 = vadd.f32 %v75, 1e-05
    %v78 = vadd.f32 %v76, 1e-05
    %v79 = vrsqrt.pop %v77
    %v80 = vrsqrt.pop %v78
    %v81 = vld [vmem:[%s2] sm:$0x1]
    %v82 = vld [vmem:[%s3] sm:$0x1]
    %v83 = vsub.f32 %v50, %v67
    %v84 = vsub.f32 %v51, %v68
    %v85 = vmul.f32 %v83, %v79
    %v86 = vmul.f32 %v84, %v80
    %v88 = vlaneseq
    %v89 = vshrl.u32 %v88, 7
    %v90 = vsub.s32 0, %v89
    %v91 = vrot.slane %v81, %v90
    %v93 = vmul.f32 %v85, %v91
    %v94 = vmul.f32 %v86, %v91
    %v96 = vlaneseq
    %v97 = vshrl.u32 %v96, 7
    %v98 = vsub.s32 0, %v97
    %v99 = vrot.slane %v82, %v98
    %v101 = vadd.f32 %v93, %v99
    %v102 = vadd.f32 %v94, %v99
    %103 = vst.msk [vmem:[#allocation7] sm:$0xff] %vm52, %v101
    %104 = vst.msk [vmem:[#allocation7 + $0x8] sm:$0xff] %vm52, %v102
    // Predicated region
    $region26: #{tpu_custom_call.1} parent=1 // pred_check
      _
    $region27: #{tpu_custom_call.1} parent=1 // pred_check_branch
      %106 = sbr.rel (0) target = $region29
    $region28: #{tpu_custom_call.1} parent=1 // pred_region
      %s108 = ssub.s32 256, 256
      %109 = vsyncadd [#allocation4], %s108
      %s110 = sshll.u32 [#allocation7], 4
      %s111 = int_to_ptr.vmem [resolvable:$true] %s110
      %116 = dma.vmem_to_hbm [thread:$0]  %s111, 256, %s4, [#allocation4], 128, 128, 8
    $region29: #{tpu_custom_call.1} parent=1 // pred_fallthru
      _
    // Predicated region
    $region30: #{tpu_custom_call.1} parent=1 // pred_check
      _
    $region31: #{tpu_custom_call.1} parent=1 // pred_check_branch
      %118 = sbr.rel (0) target = $region33
    $region32: #{tpu_custom_call.1} parent=1 // pred_region
      %119 = dma.done [#allocation4], 256
    $region33: #{tpu_custom_call.1} parent=1 // pred_fallthru
      _
    %120 = vsyncpa [#allocation3], 1
    %121 = vsyncpa [#allocation6], 1
    %122 = vsyncpa [#allocation4], 1

</llo_original>
